<compile_context>
chip_gen: v7x
topology: tpu7x:2x2x1
jax: 0.10.0
libtpu: 0.0.40
codegen_flags: <defaults>
</compile_context>

<pallas_src>
import math
import numpy as np
import jax
import jax.numpy as jnp
from jax.experimental import pallas as pl
from jax.experimental.pallas import tpu as pltpu


# ----------------------------------------------------------------------------
# Kernel 1 (one-shot): PositionalEncoding + SoftAttention  ->  u (B, D)
# ----------------------------------------------------------------------------
def user_rep_kernel(v_ref, pe_ref, qw1_ref, qw2_ref, c_ref, u_ref):
    # v_ref   : (B, L, D)  gathered seed-entity embeddings
    # pe_ref  : (L, D)     positional-encoding rows
    # qw1_ref : (1, D)     q @ W1   (hoisted in glue)
    # qw2_ref : (1, D)     q @ W2
    # c_ref   : (1, 1)     b_sa * sum(q)   (SMEM scalar)
    # u_ref   : (B, D)     user representation
    B, L, D = v_ref.shape

    # PositionalEncoding (eval mode: dropout = identity)
    vb = v_ref[...] + pe_ref[...][None, :, :]                              # (B, L, D)

    # SoftAttention with q hoisted through W1 / W2:
    #   aw[b, l] = qW1 . v[b, l] + qW2 . v[b, L-1] + b_sa * sum(q)   (no softmax)
    aw = jnp.sum(vb * qw1_ref[...][None, :, :], axis=-1)                   # (B, L)
    aw = aw + jnp.sum(vb[:, L - 1, :] * qw2_ref[...], axis=-1,
                      keepdims=True)                                       # + (B, 1)
    aw = aw + c_ref[0, 0]

    # output = att_weights^T @ v  (per dialogue)
    u_ref[...] = jnp.sum(aw[:, :, None] * vb, axis=1)                      # (B, D)


def kbrd_user_rep(seed_emb, pe, qw1, qw2, c):
    B, L, D = seed_emb.shape
    return pl.pallas_call(
        user_rep_kernel,
        out_shape=jax.ShapeDtypeStruct((B, D), jnp.float32),
        grid_spec=pltpu.PrefetchScalarGridSpec(
            num_scalar_prefetch=0,
            grid=(1,),
            in_specs=[
                pl.BlockSpec((B, L, D), lambda i: (0, 0, 0)),
                pl.BlockSpec((L, D), lambda i: (0, 0)),
                pl.BlockSpec((1, D), lambda i: (0, 0)),
                pl.BlockSpec((1, D), lambda i: (0, 0)),
                pl.BlockSpec(memory_space=pltpu.MemorySpace.SMEM),
            ],
            out_specs=pl.BlockSpec((B, D), lambda i: (0, 0)),
        ),
        compiler_params=pltpu.CompilerParams(
            dimension_semantics=("arbitrary",)),
    )(seed_emb, pe, qw1, qw2, c)


# ----------------------------------------------------------------------------
# Kernel 2 (streamed): scores tile + fused per-tile cross-entropy partials
# ----------------------------------------------------------------------------
def scores_ce_kernel(lab_ref, u_ref, ent_ref, bias_ref,
                     scores_ref, lse_ref, tgt_ref):
    # lab_ref   : (B, 1)   int32 labels (resident)
    # u_ref     : (B, D)   f32 user representation (resident)
    # ent_ref   : (TN, D)  streamed entity tile (bf16 or f32)
    # bias_ref  : (1, TN)  f32 output-Linear bias tile (padding = -1e30)
    # scores_ref: (B, TN)  f32 scores tile
    # lse_ref   : (B, 128) per-tile logsumexp, broadcast over lanes
    # tgt_ref   : (B, 128) per-tile target-score partial, broadcast over lanes
    j = pl.program_id(0)
    B, TN = scores_ref.shape

    ent = ent_ref[...]                                                     # (TN, D)
    # scores tile = u @ ent_tile^T + bias_tile (MXU, f32 accumulation)
    s = jax.lax.dot_general(u_ref[...].astype(ent.dtype), ent,
                            (((1,), (1,)), ((), ())),
                            preferred_element_type=jnp.float32)
    s = s + bias_ref[...]                                                  # (B, TN)
    scores_ref[...] = s

    # --- fused CE partials (kept per-tile so the grid axis stays "parallel") ---
    col = jax.lax.broadcasted_iota(jnp.int32, (B, TN), 1) + j * TN
    tgt = jnp.sum(jnp.where(col == lab_ref[...], s, 0.0),
                  axis=-1, keepdims=True)                                  # (B, 1)
    m = jnp.max(s, axis=-1, keepdims=True)                                 # (B, 1)
    l = jnp.sum(jnp.exp(s - m), axis=-1, keepdims=True)                    # (B, 1)
    lse = m + jnp.log(l)                                                   # (B, 1)

    lse_ref[...] = jnp.broadcast_to(lse, (B, 128))
    tgt_ref[...] = jnp.broadcast_to(tgt, (B, 128))


def kbrd_scores_and_ce_partials(u, labels_2d, ent_stream, bias_pad, tile_n):
    B, D = u.shape
    N_pad = ent_stream.shape[0]
    assert tile_n % 128 == 0 and N_pad % tile_n == 0
    n_tiles = N_pad // tile_n

    grid_spec = pltpu.PrefetchScalarGridSpec(
        num_scalar_prefetch=0,
        grid=(n_tiles,),
        in_specs=[
            pl.BlockSpec((B, 1), lambda j: (0, 0)),             # labels (resident)
            pl.BlockSpec((B, D), lambda j: (0, 0)),             # u (resident)
            pl.BlockSpec((tile_n, D), lambda j: (j, 0)),        # entity tile (streamed)
            pl.BlockSpec((1, tile_n), lambda j: (0, j)),        # bias tile (streamed)
        ],
        out_specs=[
            pl.BlockSpec((B, tile_n), lambda j: (0, j)),        # scores tile
            pl.BlockSpec((B, 128), lambda j: (0, j)),           # per-tile lse
            pl.BlockSpec((B, 128), lambda j: (0, j)),           # per-tile target partial
        ],
    )
    return pl.pallas_call(
        scores_ce_kernel,
        out_shape=(jax.ShapeDtypeStruct((B, N_pad), jnp.float32),
                   jax.ShapeDtypeStruct((B, n_tiles * 128), jnp.float32),
                   jax.ShapeDtypeStruct((B, n_tiles * 128), jnp.float32)),
        grid_spec=grid_spec,
        compiler_params=pltpu.CompilerParams(
            dimension_semantics=("parallel",),       # no carry -> v7x megacore sharding
            vmem_limit_bytes=48 * 1024 * 1024),      # portable: < v7x 64 MiB physical
        cost_estimate=pl.CostEstimate(
            flops=2 * B * N_pad * D,
            transcendentals=B * N_pad,
            bytes_accessed=(N_pad * D * ent_stream.dtype.itemsize
                            + N_pad * 4 + B * N_pad * 4 + B * D * 4)),
    )(labels_2d, u, ent_stream, bias_pad)


# ----------------------------------------------------------------------------
# Glue: tiling choice, parameter construction, full forward
# ----------------------------------------------------------------------------
def _pick_tile_n(n_entity, dim, itemsize, block_budget_bytes=4 << 20):
    """N-tile (multiple of 128) such that one streamed (tile_n, dim) entity block
    stays within block_budget_bytes (the pipeline double-buffers it).
    4 MiB @ D=128/bf16 -> tile_n=16384: <=8 MiB double-buffered (fits v7x's
    64 MiB VMEM with headroom) and >=4 grid steps at n_entity~64k."""
    tn = max(128, (block_budget_bytes // (dim * itemsize)) // 128 * 128)
    n_pad128 = ((n_entity + 127) // 128) * 128
    return int(min(tn, n_pad128))


def make_positional_encoding(max_len, d_model):
    pe = np.zeros((max_len, d_model), np.float32)
    position = np.arange(0, max_len, dtype=np.float32)[:, None]
    div_term = np.exp(np.arange(0, d_model, 2, dtype=np.float32)
                      * (-math.log(10000.0) / d_model))
    pe[:, 0::2] = np.sin(position * div_term) / 1000.0
    pe[:, 1::2] = np.cos(position * div_term) / 1000.0
    return jnp.asarray(pe)


def xavier_uniform(key, shape, gain=1.414):
    fan_out, fan_in = shape[0], shape[-1]
    bound = gain * math.sqrt(6.0 / (fan_in + fan_out))
    return jax.random.uniform(key, shape, jnp.float32, -bound, bound)


def init_params(key, n_entity, dim, max_len=100):
    ks = jax.random.split(key, 6)
    bound = 1.0 / math.sqrt(dim)
    return dict(
        entity_emb=0.1 * jax.random.normal(ks[0], (n_entity, dim), jnp.float32),
        pe=make_positional_encoding(max_len, dim),
        W1=xavier_uniform(ks[1], (dim, dim)),
        W2=xavier_uniform(ks[2], (dim, dim)),
        q=xavier_uniform(ks[3], (1, dim)),
        b_sa=jax.random.uniform(ks[4], (1, 1), jnp.float32, -bound, bound),
        out_bias=jax.random.uniform(ks[5], (1, n_entity), jnp.float32, -bound, bound),
    )


def kbrd_forward(params, seed_ids, labels, tile_n=None, stream_dtype=jnp.bfloat16):
    """seed_ids: (B, L) int32 entity ids per dialogue; labels: (B,) int32."""
    ent = params["entity_emb"]                                   # (N, D) f32
    N, D = ent.shape
    B, L = seed_ids.shape

    itemsize = np.dtype(stream_dtype).itemsize
    if tile_n is None:
        tile_n = _pick_tile_n(N, D, itemsize)

    # Pad N to a multiple of tile_n: padded entity rows are 0 and padded bias is
    # -1e30, so padded columns contribute ~0 to the CE logsumexp and are sliced
    # off the returned scores.  Labels are < N, so the target partial is unaffected.
    N_pad = ((N + tile_n - 1) // tile_n) * tile_n
    pad = N_pad - N

    ent_stream = ent.astype(stream_dtype)                        # bf16 stream by default
    bias_pad = params["out_bias"]
    if pad:
        ent_stream = jnp.concatenate(
            [ent_stream, jnp.zeros((pad, D), stream_dtype)], axis=0)
        bias_pad = jnp.concatenate(
            [bias_pad, jnp.full((1, pad), -1e30, jnp.float32)], axis=1)

    # seed-entity gather + algebraic hoist of q through W1 / W2 (tiny glue)
    seed_emb = jnp.take(ent, seed_ids, axis=0)                   # (B, L, D)
    pe = params["pe"][:L]                                        # (L, D)
    qw1 = params["q"] @ params["W1"]                             # (1, D)
    qw2 = params["q"] @ params["W2"]                             # (1, D)
    c = (params["b_sa"] * jnp.sum(params["q"])).astype(jnp.float32)  # (1, 1)

    # Kernel 1: user representation (computed exactly once, not per entity tile)
    u = kbrd_user_rep(seed_emb, pe, qw1, qw2, c)                 # (B, D) f32

    # Kernel 2: streamed scores + fused per-tile CE partials
    labels_2d = labels[:, None].astype(jnp.int32)
    scores_pad, lse_part, tgt_part = kbrd_scores_and_ce_partials(
        u, labels_2d, ent_stream, bias_pad, tile_n)

    # Final CE combine (O(B * n_tiles) glue)
    n_tiles = N_pad // tile_n
    lse_t = lse_part.reshape(B, n_tiles, 128)[:, :, 0]           # (B, n_tiles)
    tgt = jnp.sum(tgt_part.reshape(B, n_tiles, 128)[:, :, 0], axis=1)  # (B,)
    m_star = jnp.max(lse_t, axis=1)
    lse = m_star + jnp.log(jnp.sum(jnp.exp(lse_t - m_star[:, None]), axis=1))
    loss = jnp.mean(lse - tgt)

    scores = scores_pad[:, :N]
    return dict(scores=scores, base_loss=loss, loss=loss)


# ----------------------------------------------------------------------------
# Pure-numpy reference (mirrors the PyTorch forward; optional stream quantization)
# ----------------------------------------------------------------------------
def reference_forward(params, seed_ids, labels, stream_dtype=None):
    ent = np.asarray(params["entity_emb"], np.float32)
    pe = np.asarray(params["pe"], np.float32)
    W1 = np.asarray(params["W1"]); W2 = np.asarray(params["W2"])
    q = np.asarray(params["q"]); b_sa = float(np.asarray(params["b_sa"])[0, 0])
    out_bias = np.asarray(params["out_bias"])[0]
    seed_ids = np.asarray(seed_ids); labels = np.asarray(labels)
    B, L = seed_ids.shape
    u_list = []
    for b in range(B):
        v = ent[seed_ids[b]] + pe[:L]
        vn = v[-1]
        aw = np.array([q[0] @ (W1 @ v[i] + W2 @ vn + b_sa) for i in range(L)])
        u_list.append(aw @ v)
    u = np.stack(u_list).astype(np.float32)

    if stream_dtype is not None and np.dtype(stream_dtype) != np.dtype(np.float32):
        quant = lambda a: np.asarray(
            jnp.asarray(a).astype(stream_dtype).astype(jnp.float32))
        ent_s, u_s = quant(ent), quant(u)
    else:
        ent_s, u_s = ent, u

    scores = u_s @ ent_s.T + out_bias
    m = scores.max(axis=-1, keepdims=True)
    lse = m[:, 0] + np.log(np.exp(scores - m).sum(-1))
    tgt = scores[np.arange(B), labels]
    loss = np.mean(lse - tgt)
    return scores, loss


if __name__ == "__main__":
    key = jax.random.PRNGKey(0)
    # KBRD default dim is 128 (lane-dense); small shapes, 4 N-tiles at tile_n=128.
    n_entity, dim, batch, seed_len = 512, 128, 2, 8

    k_param, k_seed, k_lab = jax.random.split(key, 3)
    params = init_params(k_param, n_entity, dim)
    seed_ids = jax.random.randint(k_seed, (batch, seed_len), 0, n_entity, jnp.int32)
    labels = jax.random.randint(k_lab, (batch,), 0, n_entity, jnp.int32)

    # 1) exact f32 streaming, 4 N-tiles
    out32 = kbrd_forward(params, seed_ids, labels, tile_n=128,
                         stream_dtype=jnp.float32)
    jax.block_until_ready(out32)
    ref_scores, ref_loss = reference_forward(params, seed_ids, labels)
    np.testing.assert_allclose(np.asarray(out32["scores"]), ref_scores,
                               rtol=1e-3, atol=1e-3)
    np.testing.assert_allclose(float(out32["loss"]), ref_loss, rtol=1e-3, atol=1e-3)

    # 2) default bf16 streaming (perf path), checked against a bf16-quantized reference
    out16 = kbrd_forward(params, seed_ids, labels, tile_n=128)
    jax.block_until_ready(out16)
    ref_scores_q, ref_loss_q = reference_forward(params, seed_ids, labels,
                                                 stream_dtype=jnp.bfloat16)
    np.testing.assert_allclose(np.asarray(out16["scores"]), ref_scores_q,
                               rtol=2e-3, atol=2e-3)
    np.testing.assert_allclose(float(out16["loss"]), ref_loss_q, rtol=2e-3, atol=2e-3)
    # sanity: bf16 streaming stays close to the full-f32 module semantics
    np.testing.assert_allclose(np.asarray(out16["scores"]), ref_scores,
                               rtol=5e-2, atol=5e-2)

    # 3) non-multiple-of-128 vocabulary -> padded streaming path (auto tile_n)
    n_odd = 500
    params_odd = init_params(jax.random.PRNGKey(1), n_odd, dim)
    seed_odd = jax.random.randint(jax.random.PRNGKey(2), (batch, seed_len),
                                  0, n_odd, jnp.int32)
    lab_odd = jax.random.randint(jax.random.PRNGKey(3), (batch,), 0, n_odd, jnp.int32)
    out_odd = kbrd_forward(params_odd, seed_odd, lab_odd, stream_dtype=jnp.float32)
    jax.block_until_ready(out_odd)
    ref_s_odd, ref_l_odd = reference_forward(params_odd, seed_odd, lab_odd)
    np.testing.assert_allclose(np.asarray(out_odd["scores"]), ref_s_odd,
                               rtol=1e-3, atol=1e-3)
    np.testing.assert_allclose(float(out_odd["loss"]), ref_l_odd, rtol=1e-3, atol=1e-3)

    print("KERNEL_OK")
</pallas_src>

<mosaic_0001>
module attributes {stable_mosaic.version = 11 : i64} {
  func.func @user_rep_kernel(%arg0: i32, %arg1: memref<2x8x128xf32, #tpu.memory_space<vmem>>, %arg2: memref<8x128xf32, #tpu.memory_space<vmem>>, %arg3: memref<1x128xf32, #tpu.memory_space<vmem>>, %arg4: memref<1x128xf32, #tpu.memory_space<vmem>>, %arg5: memref<1x1xf32, #tpu.memory_space<smem>>, %arg6: memref<2x128xf32, #tpu.memory_space<vmem>>) attributes {dimension_semantics = [#tpu.dimension_semantics<arbitrary>], iteration_bounds = array<i64: 1>, scalar_prefetch = 0 : i64, scratch_operands = 0 : i64, tpu.core_type = #tpu.core_type<tc>, window_params = [{pipeline_mode = #tpu.pipeline_mode<synchronous>, transform_indices = @transform_0, window_bounds = array<i64: 2, 8, 128>}, {pipeline_mode = #tpu.pipeline_mode<synchronous>, transform_indices = @transform_1, window_bounds = array<i64: 8, 128>}, {pipeline_mode = #tpu.pipeline_mode<synchronous>, transform_indices = @transform_2, window_bounds = array<i64: 1, 128>}, {pipeline_mode = #tpu.pipeline_mode<synchronous>, transform_indices = @transform_3, window_bounds = array<i64: 1, 128>}, {transform_indices = @transform_4, window_bounds = array<i64: 1, 1>}, {pipeline_mode = #tpu.pipeline_mode<synchronous>, transform_indices = @transform_5, window_bounds = array<i64: 2, 128>}]} {
    %c0 = arith.constant 0 : index
    %c0_0 = arith.constant 0 : index
    %c0_1 = arith.constant 0 : index
    %0 = vector.load %arg1[%c0, %c0_0, %c0_1] : memref<2x8x128xf32, #tpu.memory_space<vmem>>, vector<2x8x128xf32>
    %c0_2 = arith.constant 0 : index
    %c0_3 = arith.constant 0 : index
    %1 = vector.load %arg2[%c0_2, %c0_3] : memref<8x128xf32, #tpu.memory_space<vmem>>, vector<8x128xf32>
    %2 = vector.shape_cast %1 : vector<8x128xf32> to vector<1x8x128xf32>
    %3 = vector.broadcast %2 : vector<1x8x128xf32> to vector<2x8x128xf32>
    %4 = arith.addf %0, %3 : vector<2x8x128xf32>
    %c0_4 = arith.constant 0 : index
    %c0_5 = arith.constant 0 : index
    %5 = vector.load %arg3[%c0_4, %c0_5] : memref<1x128xf32, #tpu.memory_space<vmem>>, vector<1x128xf32>
    %6 = vector.shape_cast %5 : vector<1x128xf32> to vector<1x1x128xf32>
    %7 = vector.broadcast %6 : vector<1x1x128xf32> to vector<2x8x128xf32>
    %8 = arith.mulf %4, %7 : vector<2x8x128xf32>
    %cst = arith.constant dense<0.000000e+00> : vector<2x8xf32>
    %9 = vector.multi_reduction <add>, %8, %cst [2] : vector<2x8x128xf32> to vector<2x8xf32>
    %10 = vector.extract_strided_slice %4 {offsets = [0, 7, 0], sizes = [2, 1, 128], strides = [1, 1, 1]} : vector<2x8x128xf32> to vector<2x1x128xf32>
    %11 = vector.shape_cast %10 : vector<2x1x128xf32> to vector<2x128xf32>
    %c0_6 = arith.constant 0 : index
    %c0_7 = arith.constant 0 : index
    %12 = vector.load %arg4[%c0_6, %c0_7] : memref<1x128xf32, #tpu.memory_space<vmem>>, vector<1x128xf32>
    %13 = vector.broadcast %12 : vector<1x128xf32> to vector<2x128xf32>
    %14 = arith.mulf %11, %13 : vector<2x128xf32>
    %cst_8 = arith.constant dense<0.000000e+00> : vector<2xf32>
    %15 = vector.multi_reduction <add>, %14, %cst_8 [1] : vector<2x128xf32> to vector<2xf32>
    %16 = vector.shape_cast %15 : vector<2xf32> to vector<2x1xf32>
    %17 = vector.broadcast %16 : vector<2x1xf32> to vector<2x8xf32>
    %18 = arith.addf %9, %17 : vector<2x8xf32>
    %c0_9 = arith.constant 0 : index
    %c0_10 = arith.constant 0 : index
    %19 = memref.load %arg5[%c0_9, %c0_10] : memref<1x1xf32, #tpu.memory_space<smem>>
    %20 = vector.broadcast %19 : f32 to vector<2x8xf32>
    %21 = arith.addf %18, %20 : vector<2x8xf32>
    %22 = vector.shape_cast %21 : vector<2x8xf32> to vector<2x8x1xf32>
    %23 = vector.broadcast %22 : vector<2x8x1xf32> to vector<2x8x128xf32>
    %24 = arith.mulf %23, %4 : vector<2x8x128xf32>
    %cst_11 = arith.constant dense<0.000000e+00> : vector<2x128xf32>
    %25 = vector.multi_reduction <add>, %24, %cst_11 [1] : vector<2x8x128xf32> to vector<2x128xf32>
    %c0_12 = arith.constant 0 : index
    %c0_13 = arith.constant 0 : index
    %26 = vector.load %arg6[%c0_12, %c0_13] : memref<2x128xf32, #tpu.memory_space<vmem>>, vector<2x128xf32>
    tpu.vector_store %arg6[%c0_12, %c0_13], %25 {strides = array<i32>} : memref<2x128xf32, #tpu.memory_space<vmem>>, vector<2x128xf32>,
    return
  }
  func.func @transform_0(%arg0: i32) -> (i32, i32, i32) {
    %c0_i32 = arith.constant 0 : i32
    %c0_i32_0 = arith.constant 0 : i32
    %c0_i32_1 = arith.constant 0 : i32
    %c0_i32_2 = arith.constant 0 : i32
    return %c0_i32, %c0_i32_0, %c0_i32_1 : i32, i32, i32
  }
  func.func @transform_1(%arg0: i32) -> (i32, i32) {
    %c0_i32 = arith.constant 0 : i32
    %c0_i32_0 = arith.constant 0 : i32
    %c0_i32_1 = arith.constant 0 : i32
    return %c0_i32, %c0_i32_0 : i32, i32
  }
  func.func @transform_2(%arg0: i32) -> (i32, i32) {
    %c0_i32 = arith.constant 0 : i32
    %c0_i32_0 = arith.constant 0 : i32
    %c0_i32_1 = arith.constant 0 : i32
    return %c0_i32, %c0_i32_0 : i32, i32
  }
  func.func @transform_3(%arg0: i32) -> (i32, i32) {
    %c0_i32 = arith.constant 0 : i32
    %c0_i32_0 = arith.constant 0 : i32
    %c0_i32_1 = arith.constant 0 : i32
    return %c0_i32, %c0_i32_0 : i32, i32
  }
  func.func @transform_4(%arg0: i32) -> (i32, i32) {
    %c0_i32 = arith.constant 0 : i32
    %c0_i32_0 = arith.constant 0 : i32
    %c0_i32_1 = arith.constant 0 : i32
    return %c0_i32, %c0_i32_0 : i32, i32
  }
  func.func @transform_5(%arg0: i32) -> (i32, i32) {
    %c0_i32 = arith.constant 0 : i32
    %c0_i32_0 = arith.constant 0 : i32
    %c0_i32_1 = arith.constant 0 : i32
    return %c0_i32, %c0_i32_0 : i32, i32
  }
}

</mosaic_0001>

<llo_original>
// kernel: tpu_custom_call.1
$region0: #{tpu_custom_call.1}
  #allocation0 [shape = 'u32[]', space=smem, size = 0x4, offset = 0x4, fixed_abs, tag = 'smem constant byte address 0x4 - core index']
  #allocation1 [shape = 'u32[144,128]{1,0:T(1,128)}', space=vmem, size = 0x12000, scoped, tag = 'internal scratch']
  #allocation2 [shape = 'f32[1,1]{1,0:T(1,128)S(6)}', space=smem, size = 0x200, scoped, tag = 'scoped memory for tpu_custom_call.1']
  %s0 = inlined_call_operand.hbm [shape: f32[2,8,128], index: 0, kind: input, shape index: {}]
  %s1 = inlined_call_operand.hbm [shape: f32[8,128], index: 1, kind: input, shape index: {}]
  %s2 = inlined_call_operand.vmem [shape: f32[1,128], index: 2, kind: input, shape index: {}]
  %s3 = inlined_call_operand.vmem [shape: f32[1,128], index: 3, kind: input, shape index: {}]
  %s4 = inlined_call_operand.<no memory space> [shape: f32[1,1], index: 4, kind: input, shape index: {}]
  %s5 = inlined_call_operand.hbm [shape: f32[2,128], index: 5, kind: output, shape index: {}]
  %s6 = sld [smem:[#allocation0]]
  $region38: #{tpu_custom_call.1} parent=0
    _
  %s8 = ssub.s32 1, %s6
  %s9 = scalar_select 0, %s8, %s6
  %10 = sst [smem:[#allocation2]] %s4
  $region1: #{tpu_custom_call.1} parent=0
    #allocation3 [shape = 'u8[8192]{0}', space=vmem, size = 0x2000, scoped, tag = 'input window, operand 0, single buffered']
    #allocation4 [shape = 's32[1]{0}', space=sflag, size = 0x4, scoped, tag = 'scoped memory for tpu_custom_call.1']
    #allocation5 [shape = 's32[1]{0}', space=sflag, size = 0x4, scoped, tag = 'scoped memory for tpu_custom_call.1']
    #allocation6 [shape = 'u8[4096]{0}', space=vmem, size = 0x1000, scoped, tag = 'input window, operand 1, single buffered']
    #allocation7 [shape = 's32[1]{0}', space=sflag, size = 0x4, scoped, tag = 'scoped memory for tpu_custom_call.1']
    #allocation8 [shape = 'u8[1024]{0}', space=vmem, size = 0x400, scoped, tag = 'output window, operand 0, single buffered']
    %11 = vsyncpa [#allocation4], 0
    %12 = vsyncpa [#allocation7], 0
    %13 = vsyncpa [#allocation5], 0
    // Predicated region
    $region2: #{tpu_custom_call.1} parent=1 // pred_check
      _
    $region3: #{tpu_custom_call.1} parent=1 // pred_check_branch
      %15 = sbr.rel (0) target = $region5
    $region4: #{tpu_custom_call.1} parent=1 // pred_region
      %s17 = ssub.s32 256, 256
      %18 = vsyncadd [#allocation4], %s17
      %s19 = sshll.u32 [#allocation3], 4
      %s20 = int_to_ptr.vmem [resolvable:$true] %s19
      %25 = dma.hbm_to_vmem [thread:$0]  %s0, 256, %s20, [#allocation4], 128, 128, 8
    $region5: #{tpu_custom_call.1} parent=1 // pred_fallthru
      _
    // Predicated region
    $region6: #{tpu_custom_call.1} parent=1 // pred_check
      _
    $region7: #{tpu_custom_call.1} parent=1 // pred_check_branch
      %27 = sbr.rel (0) target = $region9
    $region8: #{tpu_custom_call.1} parent=1 // pred_region
      %s29 = ssub.s32 128, 128
      %30 = vsyncadd [#allocation7], %s29
      %s32 = sshll.u32 [#allocation6], 4
      %s33 = int_to_ptr.vmem [resolvable:$true] %s32
      %35 = dma.hbm_to_vmem [thread:$0]  %s1, 128, %s33, [#allocation7]
    $region9: #{tpu_custom_call.1} parent=1 // pred_fallthru
      _
    // Predicated region
    $region10: #{tpu_custom_call.1} parent=1 // pred_check
      _
    $region11: #{tpu_custom_call.1} parent=1 // pred_check_branch
      %37 = sbr.rel (0) target = $region13
    $region12: #{tpu_custom_call.1} parent=1 // pred_region
      _
    $region13: #{tpu_custom_call.1} parent=1 // pred_fallthru
      _
    // Predicated region
    $region14: #{tpu_custom_call.1} parent=1 // pred_check
      _
    $region15: #{tpu_custom_call.1} parent=1 // pred_check_branch
      %39 = sbr.rel (0) target = $region17
    $region16: #{tpu_custom_call.1} parent=1 // pred_region
      _
    $region17: #{tpu_custom_call.1} parent=1 // pred_fallthru
      _
    // Predicated region
    $region18: #{tpu_custom_call.1} parent=1 // pred_check
      _
    $region19: #{tpu_custom_call.1} parent=1 // pred_check_branch
      %41 = sbr.rel (0) target = $region21
    $region20: #{tpu_custom_call.1} parent=1 // pred_region
      _
    $region21: #{tpu_custom_call.1} parent=1 // pred_fallthru
      _
    // Predicated region
    $region22: #{tpu_custom_call.1} parent=1 // pred_check
      _
    $region23: #{tpu_custom_call.1} parent=1 // pred_check_branch
      %43 = sbr.rel (0) target = $region25
    $region24: #{tpu_custom_call.1} parent=1 // pred_region
      %44 = dma.done [#allocation4], 256
    $region25: #{tpu_custom_call.1} parent=1 // pred_fallthru
      _
    // Predicated region
    $region26: #{tpu_custom_call.1} parent=1 // pred_check
      _
    $region27: #{tpu_custom_call.1} parent=1 // pred_check_branch
      %46 = sbr.rel (0) target = $region29
    $region28: #{tpu_custom_call.1} parent=1 // pred_region
      %47 = dma.done [#allocation7], 128
    $region29: #{tpu_custom_call.1} parent=1 // pred_fallthru
      _
    %v48 = vld [vmem:[#allocation3] sm:$0xff]
    %v49 = vld [vmem:[#allocation3 + $0x8] sm:$0xff]
    %v50 = vld [vmem:[#allocation6] sm:$0xff]
    %v51 = vadd.f32 %v48, %v50
    %v52 = vadd.f32 %v49, %v50
    %v53 = vld [vmem:[%s2] sm:$0x1]
    %v55 = vlaneseq
    %v56 = vshrl.u32 %v55, 7
    %v57 = vsub.s32 0, %v56
    %v58 = vrot.slane %v53, %v57
    %v60 = vmul.f32 %v51, %v58
    %v61 = vmul.f32 %v52, %v58
    %62 = vadd.xlane.f32.xlu0 %v60
    %v63 = vpop.xlane.xlu0 %62
    %64 = vadd.xlane.f32.xlu0 %v61
    %v65 = vpop.xlane.xlu0 %64
    %v66 = vld [vmem:[%s3] sm:$0x1]
    %v68 = vlaneseq
    %v69 = vshrl.u32 %v68, 7
    %v70 = vsub.s32 0, %v69
    %v71 = vrot.slane %v66, %v70
    %v73 = vmul.f32 %v51, %v71
    %v74 = vmul.f32 %v52, %v71
    %v77 = vrot.slane %v74, 7
    %vm80 = vcmask 1047559
    %v81 = vsel %vm80, %v73, 0.0
    %82 = vadd.xlane.f32.xlu0 %v81
    %v83 = vpop.xlane.xlu0 %82
    %vm84 = vcmask 1040384
    %v85 = vsel %vm84, %v77, 0.0
    %86 = vadd.xlane.f32.xlu0 %v85
    %v87 = vpop.xlane.xlu0 %86
    %v90 = vlaneseq
    %v91 = vshrl.u32 %v90, 7
    %v92 = vsub.s32 7, %v91
    %v93 = vrot.slane %v83, %v92
    %v94 = vlaneseq
    %v95 = vshrl.u32 %v94, 7
    %v96 = vsub.s32 0, %v95
    %v97 = vrot.slane %v87, %v96
    %v100 = vadd.f32 %v63, %v93
    %v101 = vadd.f32 %v65, %v97
    %s102 = sld [smem:[#allocation2]]
    %v103 = vstv %s102
    %v104 = vadd.f32 %v100, %v103
    %v105 = vadd.f32 %v101, %v103
    %107 = vset.pattern.permute.xlu0 0
    %108 = vperm.xlu0 %107, %v104
    %v109 = vpop.permute.xlu0 %108
    %112 = vset.pattern.permute.xlu0 0
    %113 = vperm.xlu0 %112, %v105
    %v114 = vpop.permute.xlu0 %113
    %v116 = vmul.f32 %v109, %v51
    %v117 = vmul.f32 %v114, %v52
    %v118 = vrot.slane %v116, 4
    %v119 = vadd.f32 %v116, %v118
    %v120 = vrot.slane %v119, 2
    %v121 = vadd.f32 %v119, %v120
    %v122 = vrot.slane %v121, 1
    %v123 = vadd.f32 %v121, %v122
    %v124 = vrot.slane %v117, 4
    %v125 = vadd.f32 %v117, %v124
    %v126 = vrot.slane %v125, 2
    %v127 = vadd.f32 %v125, %v126
    %v128 = vrot.slane %v127, 1
    %v129 = vadd.f32 %v127, %v128
    %vm132 = vcmask 1041409
    %v133 = vsel %vm132, %v129, %v123
    %135 = vst [vmem:[#allocation8] sm:$0x3] %v133
    // Predicated region
    $region30: #{tpu_custom_call.1} parent=1 // pred_check
      _
    $region31: #{tpu_custom_call.1} parent=1 // pred_check_branch
      %137 = sbr.rel (0) target = $region33
    $region32: #{tpu_custom_call.1} parent=1 // pred_region
      %s139 = ssub.s32 32, 32
      %140 = vsyncadd [#allocation5], %s139
      %s142 = sshll.u32 [#allocation8], 4
      %s143 = int_to_ptr.vmem [resolvable:$true] %s142
      %145 = dma.vmem_to_hbm [thread:$0]  %s143, 32, %s5, [#allocation5]
    $region33: #{tpu_custom_call.1} parent=1 // pred_fallthru
      _
    // Predicated region
    $region34: #{tpu_custom_call.1} parent=1 // pred_check
      _
    $region35: #{tpu_custom_call.1} parent=1 // pred_check_branch
      %147 = sbr.rel (0) target = $region37
    $region36: #{tpu_custom_call.1} parent=1 // pred_region
      %148 = dma.done [#allocation5], 32
    $region37: #{tpu_custom_call.1} parent=1 // pred_fallthru
      _
    %149 = vsyncpa [#allocation4], 1
    %150 = vsyncpa [#allocation7], 1
    %151 = vsyncpa [#allocation5], 1

</llo_original>
